<compile_context>
chip_gen: v7x
topology: tpu7x:2x2x1
jax: 0.10.0
libtpu: 0.0.40
codegen_flags: <defaults>
</compile_context>

<pallas_src>
import functools

import jax
import jax.numpy as jnp
from jax.experimental import pallas as pl
from jax.experimental.pallas import tpu as pltpu


def _ls_ce_kernel(preds_ref, target_ref, out_ref, acc_ref, *,
                  epsilon, reduction, n_rows_total):
    i = pl.program_id(0)

    @pl.when(i == 0)
    def _init():
        acc_ref[0] = jnp.float32(0.0)   # running sum of fused per-row loss

    x = preds_ref[...]                              # (TILE_N, C), native dtype
    t = target_ref[...]                             # (TILE_N, 1) int32
    tile_n, n_classes = x.shape

    # Row-wise logsumexp, f32 accumulation; widen per consumer (no shared f32 copy).
    m = jnp.max(x, axis=-1, keepdims=True).astype(jnp.float32)            # (TILE_N, 1)
    se = jnp.sum(jnp.exp(x.astype(jnp.float32) - m), axis=-1, keepdims=True)
    lse = jnp.log(se) + m                                                  # (TILE_N, 1)

    # Fused smoothing + NLL weights: w = eps/C + (1-eps) * onehot(target).
    # Note: out-of-range targets silently get only the eps/C weight
    # (PyTorch nll_loss would raise); ignore_index is not supported.
    base = float(epsilon) / float(n_classes)
    col = jax.lax.broadcasted_iota(jnp.int32, (tile_n, n_classes), 1)
    w = jnp.where(col == t, jnp.float32(base + (1.0 - float(epsilon))),
                  jnp.float32(base))
    wsum = jnp.sum(x.astype(jnp.float32) * w, axis=-1, keepdims=True)      # (TILE_N, 1)

    # per_row = eps * smooth_r / C + (1 - eps) * nll_r   (epsilon blend folded in)
    per_row = lse - wsum

    # Mask rows past the true batch size (ragged last tile contains garbage).
    row = jax.lax.broadcasted_iota(jnp.int32, (tile_n, 1), 0) + i * tile_n
    valid = row < n_rows_total
    acc_ref[0] += jnp.sum(jnp.where(valid, per_row, 0.0))

    @pl.when(i == pl.num_programs(0) - 1)
    def _finalize():
        denom = jnp.float32(n_rows_total if reduction == "mean" else 1)
        out_ref[0, 0] = acc_ref[0] / denom


def _round_up(x, m):
    return ((x + m - 1) // m) * m


def _sublane_multiple(dtype):
    # Native sublane packing: f32 -> 8, bf16/f16 -> 16, int8/fp8 -> 32.
    return {4: 8, 2: 16, 1: 32}.get(jnp.dtype(dtype).itemsize, 8)


def _vmem_capacity_bytes():
    try:
        info = pltpu.get_tpu_info()
        cap = getattr(info, "vmem_capacity_bytes", None)
        if cap:
            return int(cap)
    except Exception:
        pass
    return 64 * 1024 * 1024   # conservative default (v7x has 64 MiB per core)


def _pick_tile_n(n_rows, n_classes, itemsize, sublane, vmem_budget):
    # Per-row VMEM cost model:
    #   2 * C * itemsize      double-buffered native-dtype preds tile
    #   4 * C * 4             in-kernel full-tile temps (exp, weights, product, iota)
    #   2 * 128 * 4           (tile_n, 1) int32 target blocks padded to 128 lanes, x2
    per_row = (2 * n_classes * itemsize
               + 4 * n_classes * 4
               + 2 * 128 * 4
               + 64)
    rows = max(sublane, vmem_budget // per_row)
    rows = (rows // sublane) * sublane
    rows = min(rows, _round_up(n_rows, sublane))
    return max(sublane, rows)


def label_smoothing_cross_entropy(preds, target, epsilon=0.1, reduction="mean"):
    """preds: (N, C) float logits; target: (N,) int class indices. Returns scalar."""
    assert reduction in ("mean", "sum")
    n_rows, n_classes = preds.shape
    target2d = target.reshape(n_rows, 1).astype(jnp.int32)

    itemsize = jnp.dtype(preds.dtype).itemsize
    sublane = _sublane_multiple(preds.dtype)

    vmem_cap = _vmem_capacity_bytes()
    vmem_limit = max(32 * 1024 * 1024, int(vmem_cap * 0.7))
    tile_budget = vmem_limit // 2    # keep the working set well under the scoped limit
    tile_n = _pick_tile_n(n_rows, n_classes, itemsize, sublane, tile_budget)
    num_tiles = pl.cdiv(n_rows, tile_n)

    kernel = functools.partial(
        _ls_ce_kernel,
        epsilon=float(epsilon),
        reduction=reduction,
        n_rows_total=n_rows,
    )
    out = pl.pallas_call(
        kernel,
        out_shape=jax.ShapeDtypeStruct((1, 1), jnp.float32),
        grid=(num_tiles,),
        in_specs=[
            pl.BlockSpec((tile_n, n_classes), lambda i: (i, 0)),  # preds tile (native dtype)
            pl.BlockSpec((tile_n, 1), lambda i: (i, 0)),          # target indices
        ],
        out_specs=pl.BlockSpec(memory_space=pltpu.SMEM),          # single scalar result
        scratch_shapes=[pltpu.SMEM((1,), jnp.float32)],           # fused loss accumulator
        compiler_params=pltpu.CompilerParams(
            dimension_semantics=("arbitrary",),   # accumulate across batch tiles
            vmem_limit_bytes=vmem_limit,
        ),
    )(preds, target2d)
    return out[0, 0]


if __name__ == "__main__":
    key = jax.random.PRNGKey(0)
    k1, k2 = jax.random.split(key)

    def ref_fn(p, t, eps, reduction):
        lp = jax.nn.log_softmax(p.astype(jnp.float32), axis=-1)
        sm = -jnp.sum(lp, axis=-1)
        nl = -jnp.take_along_axis(lp, t[:, None], axis=-1)[:, 0]
        if reduction == "mean":
            sm, nl = jnp.mean(sm), jnp.mean(nl)
        else:
            sm, nl = jnp.sum(sm), jnp.sum(nl)
        return eps * (sm / p.shape[-1]) + (1.0 - eps) * nl

    # Small shapes consistent with the module: batch=8, num_classes=32.
    N, C = 8, 32
    preds = jax.random.normal(k1, (N, C), dtype=jnp.float32)
    target = jax.random.randint(k2, (N,), 0, C, dtype=jnp.int32)

    out = label_smoothing_cross_entropy(preds, target, epsilon=0.1, reduction="mean")
    out = jax.block_until_ready(out)
    assert jnp.allclose(out, ref_fn(preds, target, 0.1, "mean"), atol=1e-5, rtol=1e-5), out

    out_sum = label_smoothing_cross_entropy(preds, target, epsilon=0.1, reduction="sum")
    out_sum = jax.block_until_ready(out_sum)
    assert jnp.allclose(out_sum, ref_fn(preds, target, 0.1, "sum"), atol=1e-5, rtol=1e-5), out_sum

    # Ragged batch (N not a multiple of the sublane tile) exercises the row mask.
    N2 = 20
    preds2 = jax.random.normal(k1, (N2, C), dtype=jnp.float32)
    target2 = jax.random.randint(k2, (N2,), 0, C, dtype=jnp.int32)
    out2 = label_smoothing_cross_entropy(preds2, target2, epsilon=0.1, reduction="mean")
    out2 = jax.block_until_ready(out2)
    assert jnp.allclose(out2, ref_fn(preds2, target2, 0.1, "mean"), atol=1e-5, rtol=1e-5), out2

    # bf16 logits exercise the dtype-aware sublane rounding + per-consumer widening.
    N3, C3 = 24, 64
    preds3 = jax.random.normal(k1, (N3, C3), dtype=jnp.bfloat16)
    target3 = jax.random.randint(k2, (N3,), 0, C3, dtype=jnp.int32)
    out3 = label_smoothing_cross_entropy(preds3, target3, epsilon=0.1, reduction="mean")
    out3 = jax.block_until_ready(out3)
    assert jnp.allclose(out3, ref_fn(preds3, target3, 0.1, "mean"), atol=1e-4, rtol=1e-4), out3

    print("KERNEL_OK")
</pallas_src>

<mosaic_0001>
module attributes {stable_mosaic.version = 11 : i64} {
  func.func @_ls_ce_kernel(%arg0: i32, %arg1: memref<8x32xf32, #tpu.memory_space<vmem>>, %arg2: memref<8x1xi32, #tpu.memory_space<vmem>>, %arg3: memref<1x1xf32, #tpu.memory_space<smem>>, %arg4: memref<1xf32, #tpu.memory_space<smem>>) attributes {dimension_semantics = [#tpu.dimension_semantics<arbitrary>], iteration_bounds = array<i64: 1>, scalar_prefetch = 0 : i64, scratch_operands = 1 : i64, tpu.core_type = #tpu.core_type<tc>, window_params = [{transform_indices = @transform_0, window_bounds = array<i64: 8, 32>}, {transform_indices = @transform_1, window_bounds = array<i64: 8, 1>}, {transform_indices = @transform_2, window_bounds = array<i64: 1, 1>}]} {
    %c0_i32 = arith.constant 0 : i32
    %0 = arith.cmpi eq, %arg0, %c0_i32 : i32
    %1 = arith.extui %0 : i1 to i32
    %c0_i32_0 = arith.constant 0 : i32
    %2 = arith.cmpi ne, %1, %c0_i32_0 : i32
    scf.if %2 {
      %cst_15 = arith.constant 0.000000e+00 : f32
      %c0_16 = arith.constant 0 : index
      %42 = memref.load %arg4[%c0_16] : memref<1xf32, #tpu.memory_space<smem>>
      memref.store %cst_15, %arg4[%c0_16] : memref<1xf32, #tpu.memory_space<smem>>
    } else {
    }
    %c0 = arith.constant 0 : index
    %c0_1 = arith.constant 0 : index
    %3 = vector.load %arg1[%c0, %c0_1] : memref<8x32xf32, #tpu.memory_space<vmem>>, vector<8x32xf32>
    %c0_2 = arith.constant 0 : index
    %c0_3 = arith.constant 0 : index
    %4 = vector.load %arg2[%c0_2, %c0_3] : memref<8x1xi32, #tpu.memory_space<vmem>>, vector<8x1xi32>
    %cst = arith.constant dense<0xFF800000> : vector<8xf32>
    %5 = vector.multi_reduction <maximumf>, %3, %cst [1] : vector<8x32xf32> to vector<8xf32>
    %6 = vector.shape_cast %5 : vector<8xf32> to vector<8x1xf32>
    %7 = vector.broadcast %6 : vector<8x1xf32> to vector<8x32xf32>
    %8 = arith.subf %3, %7 : vector<8x32xf32>
    %9 = math.exp %8 : vector<8x32xf32>
    %cst_4 = arith.constant dense<0.000000e+00> : vector<8xf32>
    %10 = vector.multi_reduction <add>, %9, %cst_4 [1] : vector<8x32xf32> to vector<8xf32>
    %11 = vector.shape_cast %10 : vector<8xf32> to vector<8x1xf32>
    %12 = math.log %11 : vector<8x1xf32>
    %13 = arith.addf %12, %6 : vector<8x1xf32>
    %14 = tpu.iota {dimensions = array<i32: 1>} : vector<8x32xi32>
    %15 = vector.broadcast %4 : vector<8x1xi32> to vector<8x32xi32>
    %16 = arith.cmpi eq, %14, %15 : vector<8x32xi32>
    %cst_5 = arith.constant 0.903124988 : f32
    %cst_6 = arith.constant 3.125000e-03 : f32
    %17 = vector.broadcast %cst_5 : f32 to vector<8x32xf32>
    %18 = vector.broadcast %cst_6 : f32 to vector<8x32xf32>
    %19 = arith.select %16, %17, %18 : vector<8x32xi1>, vector<8x32xf32>
    %20 = arith.mulf %3, %19 : vector<8x32xf32>
    %cst_7 = arith.constant dense<0.000000e+00> : vector<8xf32>
    %21 = vector.multi_reduction <add>, %20, %cst_7 [1] : vector<8x32xf32> to vector<8xf32>
    %22 = vector.shape_cast %21 : vector<8xf32> to vector<8x1xf32>
    %23 = arith.subf %13, %22 : vector<8x1xf32>
    %24 = tpu.iota {dimensions = array<i32: 0>} : vector<8x1xi32>
    %c8_i32 = arith.constant 8 : i32
    %25 = arith.muli %arg0, %c8_i32 : i32
    %26 = vector.broadcast %25 : i32 to vector<8x1xi32>
    %27 = arith.addi %24, %26 : vector<8x1xi32>
    %c8_i32_8 = arith.constant 8 : i32
    %28 = vector.broadcast %c8_i32_8 : i32 to vector<8x1xi32>
    %29 = arith.cmpi slt, %27, %28 : vector<8x1xi32>
    %c0_9 = arith.constant 0 : index
    %30 = memref.load %arg4[%c0_9] : memref<1xf32, #tpu.memory_space<smem>>
    %cst_10 = arith.constant 0.000000e+00 : f32
    %31 = vector.broadcast %cst_10 : f32 to vector<8x1xf32>
    %32 = arith.select %29, %23, %31 : vector<8x1xi1>, vector<8x1xf32>
    %33 = vector.shape_cast %32 : vector<8x1xf32> to vector<1x8x1xf32>
    %cst_11 = arith.constant dense<0.000000e+00> : vector<1xf32>
    %34 = vector.multi_reduction <add>, %33, %cst_11 [1, 2] : vector<1x8x1xf32> to vector<1xf32>
    %35 = vector.shape_cast %34 : vector<1xf32> to vector<1x1x1xf32>
    %36 = vector.extract %35[0, 0, 0] : f32 from vector<1x1x1xf32>
    %37 = arith.addf %30, %36 : f32
    %c0_12 = arith.constant 0 : index
    %38 = memref.load %arg4[%c0_12] : memref<1xf32, #tpu.memory_space<smem>>
    memref.store %37, %arg4[%c0_12] : memref<1xf32, #tpu.memory_space<smem>>
    %c0_i32_13 = arith.constant 0 : i32
    %39 = arith.cmpi eq, %arg0, %c0_i32_13 : i32
    %40 = arith.extui %39 : i1 to i32
    %c0_i32_14 = arith.constant 0 : i32
    %41 = arith.cmpi ne, %40, %c0_i32_14 : i32
    scf.if %41 {
      %c0_15 = arith.constant 0 : index
      %42 = memref.load %arg4[%c0_15] : memref<1xf32, #tpu.memory_space<smem>>
      %cst_16 = arith.constant 8.000000e+00 : f32
      %43 = arith.divf %42, %cst_16 : f32
      %c0_17 = arith.constant 0 : index
      %c0_18 = arith.constant 0 : index
      %44 = memref.load %arg3[%c0_17, %c0_18] : memref<1x1xf32, #tpu.memory_space<smem>>
      memref.store %43, %arg3[%c0_17, %c0_18] : memref<1x1xf32, #tpu.memory_space<smem>>
    } else {
    }
    return
  }
  func.func @transform_0(%arg0: i32) -> (i32, i32) {
    %c0_i32 = arith.constant 0 : i32
    %c0_i32_0 = arith.constant 0 : i32
    return %arg0, %c0_i32 : i32, i32
  }
  func.func @transform_1(%arg0: i32) -> (i32, i32) {
    %c0_i32 = arith.constant 0 : i32
    %c0_i32_0 = arith.constant 0 : i32
    return %arg0, %c0_i32 : i32, i32
  }
  func.func @transform_2(%arg0: i32) -> (i32, i32) {
    %c0_i32 = arith.constant 0 : i32
    %c0_i32_0 = arith.constant 0 : i32
    %c0_i32_1 = arith.constant 0 : i32
    return %c0_i32, %c0_i32_0 : i32, i32
  }
}

</mosaic_0001>

<llo_original>
// kernel: tpu_custom_call.1
$region0: #{tpu_custom_call.1}
  #allocation0 [shape = 'u32[]', space=smem, size = 0x4, offset = 0x4, fixed_abs, tag = 'smem constant byte address 0x4 - core index']
  #allocation1 [shape = 'u32[144,128]{1,0:T(1,128)}', space=vmem, size = 0x12000, scoped, tag = 'internal scratch']
  #allocation2 [shape = 'f32[1]{0:T(128)}', space=smem, size = 0x200, scoped, tag = 'scratch operand']
  %s0 = inlined_call_operand.vmem [shape: f32[8,32], index: 0, kind: input, shape index: {}]
  %s1 = inlined_call_operand.vmem [shape: s32[8,1], index: 1, kind: input, shape index: {}]
  %s2 = inlined_call_operand.hbm [shape: f32[1,1], index: 2, kind: output, shape index: {}]
  %s3 = sld [smem:[#allocation0]]
  $region26: #{tpu_custom_call.1} parent=0
    _
  %s5 = ssub.s32 1, %s3
  %s6 = scalar_select 0, %s5, %s3
  $region1: #{tpu_custom_call.1} parent=0
    #allocation3 [shape = 'u8[512]{0}', space=smem, size = 0x200, scoped, tag = 'output window, operand 0, single buffered']
    #allocation4 [shape = 's32[1]{0}', space=sflag, size = 0x4, scoped, tag = 'scoped memory for tpu_custom_call.1']
    %7 = vsyncpa [#allocation4], 0
    // Predicated region
    $region2: #{tpu_custom_call.1} parent=1 // pred_check
      _
    $region3: #{tpu_custom_call.1} parent=1 // pred_check_branch
      %9 = sbr.rel (0) target = $region5
    $region4: #{tpu_custom_call.1} parent=1 // pred_region
      _
    $region5: #{tpu_custom_call.1} parent=1 // pred_fallthru
      _
    // Predicated region
    $region6: #{tpu_custom_call.1} parent=1 // pred_check
      _
    $region7: #{tpu_custom_call.1} parent=1 // pred_check_branch
      %11 = sbr.rel (0) target = $region9
    $region8: #{tpu_custom_call.1} parent=1 // pred_region
      _
    $region9: #{tpu_custom_call.1} parent=1 // pred_fallthru
      _
    %p12 = scmp.eq.s32.totalorder 0, 0
    // Predicated region
    $region10: #{tpu_custom_call.1} parent=1 // pred_check
      %p13 = pneg %p12
    $region11: #{tpu_custom_call.1} parent=1 // pred_check_branch
      %15 = sbr.rel (%p13) target = $region13
    $region12: #{tpu_custom_call.1} parent=1 // pred_region
      %s16 = scalar_lea.smem [#allocation2], 0
      %17 = sst [smem:[%s16]] 0.0
    $region13: #{tpu_custom_call.1} parent=1 // pred_fallthru
      _
    %v18 = vld [vmem:[%s0] sm:$0xff]
    %v19 = vld [vmem:[%s1] sm:$0xff]
    %vm20 = vcmask 261120
    %v21 = vsel %vm20, %v18, -inf
    %22 = vmax.xlane.f32.xlu0 %v21
    %v23 = vpop.xlane.xlu0 %22
    %v24 = vsub.f32 %v18, %v23
    %v25 = vmul.f32 %v24, 1.442695
    %v26 = vpow.pop %v25
    %v27 = vsel %vm20, %v26, 0.0
    %28 = vadd.xlane.f32.xlu0 %v27
    %v29 = vpop.xlane.xlu0 %28
    %v30 = vlog2.pop %v29
    %v31 = vmul.f32 %v30, 0.6931472
    %v32 = vadd.f32 %v31, %v23
    %v33 = vlaneseq
    %v34 = vand.u32 %v33, 127
    %35 = vset.pattern.permute.xlu0 0
    %36 = vperm.xlu0 %35, %v19
    %v37 = vpop.permute.xlu0 %36
    %vm38 = vcmp.eq.s32.totalorder %v34, %v37
    %v39 = vsel %vm38, 0.903125, 0.003125
    %v40 = vmul.f32 %v18, %v39
    %v41 = vsel %vm20, %v40, 0.0
    %42 = vadd.xlane.f32.xlu0 %v41
    %v43 = vpop.xlane.xlu0 %42
    %v44 = vsub.f32 %v32, %v43
    %v45 = vlaneseq
    %v46 = vshrl.u32 %v45, 7
    %s47 = smul.u32 0, 8
    %v48 = vstv %s47
    %v49 = vadd.s32 %v46, %v48
    %vm50 = vcmp.lt.s32.totalorder %v49, 8
    %s51 = sld [smem:[#allocation2]]
    %v52 = vsel %vm50, %v44, 0.0
    %vm53 = vcmask 7168
    %v54 = vsel %vm53, %v52, 0.0
    %55 = vadd.xlane.f32.xlu0 %v54
    %v56 = vpop.xlane.xlu0 %55
    %v57 = vrot.slane %v56, 4
    %v58 = vadd.f32 %v56, %v57
    %v59 = vrot.slane %v58, 2
    %v60 = vadd.f32 %v58, %v59
    %v61 = vrot.slane %v60, 1
    %v62 = vadd.f32 %v60, %v61
    %s63 = vtos %v62
    %s64 = sadd.f32 %s51, %s63
    %s65 = scalar_lea.smem [#allocation2], 0
    %66 = sst [smem:[%s65]] %s64
    // Predicated region
    $region14: #{tpu_custom_call.1} parent=1 // pred_check
      %p67 = pneg %p12
    $region15: #{tpu_custom_call.1} parent=1 // pred_check_branch
      %69 = sbr.rel (%p67) target = $region17
    $region16: #{tpu_custom_call.1} parent=1 // pred_region
      %s70 = sld [smem:[#allocation2]]
      %v71 = vrcp.pop 8.0
      %s72 = vtos %v71
      %s73 = smul.f32 %s70, %s72
      %s74 = scalar_lea.smem [#allocation3], 0
      %75 = sst [smem:[%s74]] %s73
    $region17: #{tpu_custom_call.1} parent=1 // pred_fallthru
      _
    // Predicated region
    $region18: #{tpu_custom_call.1} parent=1 // pred_check
      _
    $region19: #{tpu_custom_call.1} parent=1 // pred_check_branch
      %77 = sbr.rel (0) target = $region21
    $region20: #{tpu_custom_call.1} parent=1 // pred_region
      %s79 = ssub.s32 16, 16
      %80 = vsyncadd [#allocation4], %s79
      %83 = dma.smem_to_hbm [#allocation3], 16, %s2, [#allocation4]
    $region21: #{tpu_custom_call.1} parent=1 // pred_fallthru
      _
    // Predicated region
    $region22: #{tpu_custom_call.1} parent=1 // pred_check
      _
    $region23: #{tpu_custom_call.1} parent=1 // pred_check_branch
      %85 = sbr.rel (0) target = $region25
    $region24: #{tpu_custom_call.1} parent=1 // pred_region
      %86 = dma.done [#allocation4], 16
    $region25: #{tpu_custom_call.1} parent=1 // pred_fallthru
      _
    %87 = sfence
    %88 = vsyncpa [#allocation4], 1

</llo_original>
